<compile_context>
chip_gen: v7x
topology: tpu7x:2x2x1
jax: 0.10.0
libtpu: 0.0.40
codegen_flags: <defaults>
</compile_context>

<pallas_src>
import functools

import jax
import jax.numpy as jnp
from jax.experimental import pallas as pl
from jax.experimental.pallas import tpu as pltpu


# ----------------------------------------------------------------------------- kernel
def layer_norm_kernel(x_ref, scale_ref, shift_ref, o_ref, *, eps, inv_n, emb_dim, g):
    """One row tile of LayerNorm.

    x_ref:            (rows_tile, D) input tile, D = g * emb_dim lanes.
    scale/shift_ref:  (1, D) float32 params (emb_dim params tiled g times).
    o_ref:            (rows_tile, D) output tile (input dtype).
    """
    x = x_ref[...].astype(jnp.float32)
    r = x.shape[0]

    if g == 1:
        # emb_dim occupies the full lane dimension: plain row-wise moments.
        mean = jnp.sum(x, axis=-1, keepdims=True) * inv_n
        centered = x - mean
        var = jnp.sum(centered * centered, axis=-1, keepdims=True) * inv_n
        inv_std = jax.lax.rsqrt(var + eps)
    else:
        # g original rows live side-by-side in the 128 lanes. Per-segment
        # (= per original row) moments via static lane slices: exact f32, and
        # the extra VPU/XLU work is hidden under the HBM DMA, while the HBM
        # loads/stores of this tile stay 128-lane dense.
        means = [
            jnp.sum(x[:, s * emb_dim:(s + 1) * emb_dim], axis=-1, keepdims=True) * inv_n
            for s in range(g)
        ]
        mean = jnp.concatenate(
            [jnp.broadcast_to(means[s], (r, emb_dim)) for s in range(g)], axis=-1)
        centered = x - mean
        inv_stds = []
        for s in range(g):
            c = centered[:, s * emb_dim:(s + 1) * emb_dim]
            var_s = jnp.sum(c * c, axis=-1, keepdims=True) * inv_n
            inv_stds.append(jax.lax.rsqrt(var_s + eps))
        inv_std = jnp.concatenate(
            [jnp.broadcast_to(inv_stds[s], (r, emb_dim)) for s in range(g)], axis=-1)

    o_ref[...] = (scale_ref[...] * (centered * inv_std) + shift_ref[...]).astype(o_ref.dtype)


# ----------------------------------------------------------------------------- sizing
_F32_TEMPS = 3  # ~full-size f32 intermediates live at peak inside the kernel body


def _vmem_capacity_bytes():
    try:
        info = pltpu.get_tpu_info()
        cap = getattr(info, "vmem_capacity_bytes", None)
        if cap:
            return int(cap)
    except Exception:
        pass
    return 64 * 1024 * 1024  # conservative (v7x-sized) fallback


def _tensorcores_per_chip():
    try:
        kind = jax.devices()[0].device_kind.lower()
    except Exception:
        return 1
    return 2 if ("v7" in kind or "7x" in kind) else 1


def _pick_rows_tile(rows, lane_dim, dtype_bytes, vmem_cap):
    """Rows per tile: fill ~70% of VMEM counting f32 temps; 4-8 MiB input tile."""
    pack = max(8, 32 // max(dtype_bytes, 1))  # sublane packing: 8 f32 / 16 bf16 / 32 int8

    # Per-row VMEM cost: 2x in + 2x out tiles (double-buffered DMA, input dtype)
    # plus ~_F32_TEMPS full-size f32 intermediates from the kernel body.
    per_row = lane_dim * (4 * dtype_bytes + _F32_TEMPS * 4)
    rows_tile = int(vmem_cap * 0.70) // per_row

    # Keep the *input* tile in the 4-8 MiB sweet spot. The working-set budget
    # above already pulls v7x (64 MiB VMEM) down to ~5-7 MiB; v5e/v6e hit the cap.
    row_in_bytes = lane_dim * dtype_bytes
    rows_tile = min(rows_tile, (8 * 1024 * 1024) // row_in_bytes)
    rows_tile = max(rows_tile, (4 * 1024 * 1024) // row_in_bytes)

    if rows_tile >= rows:
        return rows  # single block covering the whole array (block == full dims)
    return max(pack, (rows_tile // pack) * pack)


# ----------------------------------------------------------------------------- wrapper
def layer_norm(x, scale, shift, *, eps=1e-5, rows_tile=None):
    """x: (batch, seq, emb_dim); scale/shift: (emb_dim,). Matches PyTorch LayerNorm fwd."""
    batch, seq, emb_dim = x.shape
    rows = batch * seq
    dtype_bytes = jnp.dtype(x.dtype).itemsize
    vmem_cap = _vmem_capacity_bytes()

    # Lane-dense packing: g rows per 128-lane register when emb_dim is a small
    # divisor of 128 and rows splits evenly (contiguous row-major reshape = free).
    g = 1
    if emb_dim < 128 and 128 % emb_dim == 0 and rows % (128 // emb_dim) == 0:
        g = 128 // emb_dim
    # TODO(synk): emb_dim that neither divides 128 nor is >= 128 falls back to the
    # correct-but-lane-padded unpacked path.
    lane_dim = g * emb_dim
    rows2d = rows // g

    x2d = x.reshape(rows2d, lane_dim)  # free reshape (contiguous, row-major)
    scale_row = jnp.tile(scale.astype(jnp.float32), g).reshape(1, lane_dim)
    shift_row = jnp.tile(shift.astype(jnp.float32), g).reshape(1, lane_dim)

    if rows_tile is None:
        rows_tile = _pick_rows_tile(rows2d, lane_dim, dtype_bytes, vmem_cap)
    rows_tile = int(min(rows_tile, rows2d))

    grid = (pl.cdiv(rows2d, rows_tile),)  # ragged last block handled by Pallas masking

    # VMEM limit: double-buffered in/out tiles + f32 intermediates + resident params.
    tile_in = rows_tile * lane_dim * dtype_bytes
    temps = (_F32_TEMPS + 1) * rows_tile * lane_dim * 4
    vmem_limit = 4 * tile_in + temps + 8 * lane_dim * 4 + (2 << 20)
    vmem_limit = max(vmem_limit, 16 << 20)
    vmem_limit = int(min(vmem_limit, int(0.85 * vmem_cap)))  # generation-aware clamp

    # v7x has 2 TensorCores per chip: actually split the row grid across them.
    if _tensorcores_per_chip() >= 2:
        dim_sem = (pltpu.CORE_PARALLEL,)
    else:
        dim_sem = ("parallel",)

    kernel = functools.partial(
        layer_norm_kernel, eps=float(eps), inv_n=1.0 / emb_dim, emb_dim=emb_dim, g=g)

    cost = pl.CostEstimate(
        flops=int(8 * rows * emb_dim),
        transcendentals=int(rows),
        bytes_accessed=int(2 * rows * emb_dim * dtype_bytes + 2 * emb_dim * 4),
    )

    out2d = pl.pallas_call(
        kernel,
        out_shape=jax.ShapeDtypeStruct((rows2d, lane_dim), x.dtype),
        grid_spec=pl.GridSpec(
            grid=grid,
            in_specs=[
                pl.BlockSpec((rows_tile, lane_dim), lambda i: (i, 0)),
                pl.BlockSpec((1, lane_dim), lambda i: (0, 0)),
                pl.BlockSpec((1, lane_dim), lambda i: (0, 0)),
            ],
            out_specs=pl.BlockSpec((rows_tile, lane_dim), lambda i: (i, 0)),
        ),
        compiler_params=pltpu.CompilerParams(
            dimension_semantics=dim_sem,
            vmem_limit_bytes=vmem_limit,
        ),
        cost_estimate=cost,
    )(x2d, scale_row, shift_row)

    return out2d.reshape(batch, seq, emb_dim)


# ----------------------------------------------------------------------------- checks
def _reference(x, scale, shift, eps=1e-5):
    mean = jnp.mean(x, axis=-1, keepdims=True)
    var = jnp.mean((x - mean) ** 2, axis=-1, keepdims=True)
    return scale * ((x - mean) / jnp.sqrt(var + eps)) + shift


if __name__ == "__main__":
    key = jax.random.PRNGKey(0)

    # Shape consistent with the module: (batch, seq, emb_dim).
    batch, seq, emb_dim = 2, 8, 32
    x = jax.random.normal(key, (batch, seq, emb_dim), dtype=jnp.float32)

    # Parameters matching nn.Parameter(torch.ones/zeros(emb_dim)).
    scale = jnp.ones((emb_dim,), dtype=jnp.float32)
    shift = jnp.zeros((emb_dim,), dtype=jnp.float32)

    out = jax.block_until_ready(layer_norm(x, scale, shift))
    ref = _reference(x, scale, shift)
    assert jnp.allclose(out, ref, atol=1e-5, rtol=1e-5), "mismatch vs reference (packed path)"

    # Lane-dense emb_dim with a ragged row count (block == full array, rows not a
    # multiple of the sublane pack), plus non-trivial scale/shift.
    b2, s2, e2 = 3, 5, 128
    x2 = jax.random.normal(jax.random.PRNGKey(1), (b2, s2, e2), dtype=jnp.float32)
    sc2 = 0.5 + jax.random.uniform(jax.random.PRNGKey(2), (e2,), dtype=jnp.float32)
    sh2 = jax.random.normal(jax.random.PRNGKey(3), (e2,), dtype=jnp.float32)

    out2 = jax.block_until_ready(layer_norm(x2, sc2, sh2))
    ref2 = _reference(x2, sc2, sh2)
    assert jnp.allclose(out2, ref2, atol=1e-5, rtol=1e-5), "mismatch vs reference (ragged rows)"

    # Same data with a forced small tile -> multi-step grid with a masked ragged
    # last block (exercises the no-pad / no-slice remainder handling).
    out3 = jax.block_until_ready(layer_norm(x2, sc2, sh2, rows_tile=8))
    assert jnp.allclose(out3, ref2, atol=1e-5, rtol=1e-5), "mismatch vs reference (ragged grid)"

    print("KERNEL_OK")
</pallas_src>

<mosaic_0001>
module attributes {stable_mosaic.version = 11 : i64} {
  func.func @layer_norm_kernel(%arg0: i32, %arg1: memref<4x128xf32, #tpu.memory_space<vmem>>, %arg2: memref<1x128xf32, #tpu.memory_space<vmem>>, %arg3: memref<1x128xf32, #tpu.memory_space<vmem>>, %arg4: memref<4x128xf32, #tpu.memory_space<vmem>>) attributes {dimension_semantics = [#tpu.dimension_semantics<parallel>], iteration_bounds = array<i64: 1>, scalar_prefetch = 0 : i64, scratch_operands = 0 : i64, tpu.core_type = #tpu.core_type<tc>, window_params = [{transform_indices = @transform_0, window_bounds = array<i64: 4, 128>}, {pipeline_mode = #tpu.pipeline_mode<synchronous>, transform_indices = @transform_1, window_bounds = array<i64: 1, 128>}, {pipeline_mode = #tpu.pipeline_mode<synchronous>, transform_indices = @transform_2, window_bounds = array<i64: 1, 128>}, {transform_indices = @transform_3, window_bounds = array<i64: 4, 128>}]} {
    %c0 = arith.constant 0 : index
    %c0_0 = arith.constant 0 : index
    %0 = vector.load %arg1[%c0, %c0_0] : memref<4x128xf32, #tpu.memory_space<vmem>>, vector<4x128xf32>
    %1 = vector.extract_strided_slice %0 {offsets = [0, 0], sizes = [4, 32], strides = [1, 1]} : vector<4x128xf32> to vector<4x32xf32>
    %cst = arith.constant dense<0.000000e+00> : vector<4xf32>
    %2 = vector.multi_reduction <add>, %1, %cst [1] : vector<4x32xf32> to vector<4xf32>
    %3 = vector.shape_cast %2 : vector<4xf32> to vector<4x1xf32>
    %cst_1 = arith.constant 3.125000e-02 : f32
    %4 = vector.broadcast %cst_1 : f32 to vector<4x1xf32>
    %5 = arith.mulf %3, %4 : vector<4x1xf32>
    %6 = vector.extract_strided_slice %0 {offsets = [0, 32], sizes = [4, 32], strides = [1, 1]} : vector<4x128xf32> to vector<4x32xf32>
    %cst_2 = arith.constant dense<0.000000e+00> : vector<4xf32>
    %7 = vector.multi_reduction <add>, %6, %cst_2 [1] : vector<4x32xf32> to vector<4xf32>
    %8 = vector.shape_cast %7 : vector<4xf32> to vector<4x1xf32>
    %cst_3 = arith.constant 3.125000e-02 : f32
    %9 = vector.broadcast %cst_3 : f32 to vector<4x1xf32>
    %10 = arith.mulf %8, %9 : vector<4x1xf32>
    %11 = vector.extract_strided_slice %0 {offsets = [0, 64], sizes = [4, 32], strides = [1, 1]} : vector<4x128xf32> to vector<4x32xf32>
    %cst_4 = arith.constant dense<0.000000e+00> : vector<4xf32>
    %12 = vector.multi_reduction <add>, %11, %cst_4 [1] : vector<4x32xf32> to vector<4xf32>
    %13 = vector.shape_cast %12 : vector<4xf32> to vector<4x1xf32>
    %cst_5 = arith.constant 3.125000e-02 : f32
    %14 = vector.broadcast %cst_5 : f32 to vector<4x1xf32>
    %15 = arith.mulf %13, %14 : vector<4x1xf32>
    %16 = vector.extract_strided_slice %0 {offsets = [0, 96], sizes = [4, 32], strides = [1, 1]} : vector<4x128xf32> to vector<4x32xf32>
    %cst_6 = arith.constant dense<0.000000e+00> : vector<4xf32>
    %17 = vector.multi_reduction <add>, %16, %cst_6 [1] : vector<4x32xf32> to vector<4xf32>
    %18 = vector.shape_cast %17 : vector<4xf32> to vector<4x1xf32>
    %cst_7 = arith.constant 3.125000e-02 : f32
    %19 = vector.broadcast %cst_7 : f32 to vector<4x1xf32>
    %20 = arith.mulf %18, %19 : vector<4x1xf32>
    %21 = vector.shape_cast %5 : vector<4x1xf32> to vector<4x1xf32>
    %22 = vector.broadcast %21 : vector<4x1xf32> to vector<4x32xf32>
    %23 = vector.shape_cast %10 : vector<4x1xf32> to vector<4x1xf32>
    %24 = vector.broadcast %23 : vector<4x1xf32> to vector<4x32xf32>
    %25 = vector.shape_cast %15 : vector<4x1xf32> to vector<4x1xf32>
    %26 = vector.broadcast %25 : vector<4x1xf32> to vector<4x32xf32>
    %27 = vector.shape_cast %20 : vector<4x1xf32> to vector<4x1xf32>
    %28 = vector.broadcast %27 : vector<4x1xf32> to vector<4x32xf32>
    %29 = tpu.concatenate %22, %24, %26, %28 in 1 : vector<4x32xf32>, vector<4x32xf32>, vector<4x32xf32>, vector<4x32xf32> -> vector<4x128xf32>
    %30 = arith.subf %0, %29 : vector<4x128xf32>
    %31 = vector.extract_strided_slice %30 {offsets = [0, 0], sizes = [4, 32], strides = [1, 1]} : vector<4x128xf32> to vector<4x32xf32>
    %32 = arith.mulf %31, %31 : vector<4x32xf32>
    %cst_8 = arith.constant dense<0.000000e+00> : vector<4xf32>
    %33 = vector.multi_reduction <add>, %32, %cst_8 [1] : vector<4x32xf32> to vector<4xf32>
    %34 = vector.shape_cast %33 : vector<4xf32> to vector<4x1xf32>
    %cst_9 = arith.constant 3.125000e-02 : f32
    %35 = vector.broadcast %cst_9 : f32 to vector<4x1xf32>
    %36 = arith.mulf %34, %35 : vector<4x1xf32>
    %cst_10 = arith.constant 9.99999974E-6 : f32
    %37 = vector.broadcast %cst_10 : f32 to vector<4x1xf32>
    %38 = arith.addf %36, %37 : vector<4x1xf32>
    %39 = math.rsqrt %38 : vector<4x1xf32>
    %40 = vector.extract_strided_slice %30 {offsets = [0, 32], sizes = [4, 32], strides = [1, 1]} : vector<4x128xf32> to vector<4x32xf32>
    %41 = arith.mulf %40, %40 : vector<4x32xf32>
    %cst_11 = arith.constant dense<0.000000e+00> : vector<4xf32>
    %42 = vector.multi_reduction <add>, %41, %cst_11 [1] : vector<4x32xf32> to vector<4xf32>
    %43 = vector.shape_cast %42 : vector<4xf32> to vector<4x1xf32>
    %cst_12 = arith.constant 3.125000e-02 : f32
    %44 = vector.broadcast %cst_12 : f32 to vector<4x1xf32>
    %45 = arith.mulf %43, %44 : vector<4x1xf32>
    %cst_13 = arith.constant 9.99999974E-6 : f32
    %46 = vector.broadcast %cst_13 : f32 to vector<4x1xf32>
    %47 = arith.addf %45, %46 : vector<4x1xf32>
    %48 = math.rsqrt %47 : vector<4x1xf32>
    %49 = vector.extract_strided_slice %30 {offsets = [0, 64], sizes = [4, 32], strides = [1, 1]} : vector<4x128xf32> to vector<4x32xf32>
    %50 = arith.mulf %49, %49 : vector<4x32xf32>
    %cst_14 = arith.constant dense<0.000000e+00> : vector<4xf32>
    %51 = vector.multi_reduction <add>, %50, %cst_14 [1] : vector<4x32xf32> to vector<4xf32>
    %52 = vector.shape_cast %51 : vector<4xf32> to vector<4x1xf32>
    %cst_15 = arith.constant 3.125000e-02 : f32
    %53 = vector.broadcast %cst_15 : f32 to vector<4x1xf32>
    %54 = arith.mulf %52, %53 : vector<4x1xf32>
    %cst_16 = arith.constant 9.99999974E-6 : f32
    %55 = vector.broadcast %cst_16 : f32 to vector<4x1xf32>
    %56 = arith.addf %54, %55 : vector<4x1xf32>
    %57 = math.rsqrt %56 : vector<4x1xf32>
    %58 = vector.extract_strided_slice %30 {offsets = [0, 96], sizes = [4, 32], strides = [1, 1]} : vector<4x128xf32> to vector<4x32xf32>
    %59 = arith.mulf %58, %58 : vector<4x32xf32>
    %cst_17 = arith.constant dense<0.000000e+00> : vector<4xf32>
    %60 = vector.multi_reduction <add>, %59, %cst_17 [1] : vector<4x32xf32> to vector<4xf32>
    %61 = vector.shape_cast %60 : vector<4xf32> to vector<4x1xf32>
    %cst_18 = arith.constant 3.125000e-02 : f32
    %62 = vector.broadcast %cst_18 : f32 to vector<4x1xf32>
    %63 = arith.mulf %61, %62 : vector<4x1xf32>
    %cst_19 = arith.constant 9.99999974E-6 : f32
    %64 = vector.broadcast %cst_19 : f32 to vector<4x1xf32>
    %65 = arith.addf %63, %64 : vector<4x1xf32>
    %66 = math.rsqrt %65 : vector<4x1xf32>
    %67 = vector.shape_cast %39 : vector<4x1xf32> to vector<4x1xf32>
    %68 = vector.broadcast %67 : vector<4x1xf32> to vector<4x32xf32>
    %69 = vector.shape_cast %48 : vector<4x1xf32> to vector<4x1xf32>
    %70 = vector.broadcast %69 : vector<4x1xf32> to vector<4x32xf32>
    %71 = vector.shape_cast %57 : vector<4x1xf32> to vector<4x1xf32>
    %72 = vector.broadcast %71 : vector<4x1xf32> to vector<4x32xf32>
    %73 = vector.shape_cast %66 : vector<4x1xf32> to vector<4x1xf32>
    %74 = vector.broadcast %73 : vector<4x1xf32> to vector<4x32xf32>
    %75 = tpu.concatenate %68, %70, %72, %74 in 1 : vector<4x32xf32>, vector<4x32xf32>, vector<4x32xf32>, vector<4x32xf32> -> vector<4x128xf32>
    %c0_20 = arith.constant 0 : index
    %c0_21 = arith.constant 0 : index
    %76 = vector.load %arg2[%c0_20, %c0_21] : memref<1x128xf32, #tpu.memory_space<vmem>>, vector<1x128xf32>
    %77 = arith.mulf %30, %75 : vector<4x128xf32>
    %78 = vector.broadcast %76 : vector<1x128xf32> to vector<4x128xf32>
    %79 = arith.mulf %78, %77 : vector<4x128xf32>
    %c0_22 = arith.constant 0 : index
    %c0_23 = arith.constant 0 : index
    %80 = vector.load %arg3[%c0_22, %c0_23] : memref<1x128xf32, #tpu.memory_space<vmem>>, vector<1x128xf32>
    %81 = vector.broadcast %80 : vector<1x128xf32> to vector<4x128xf32>
    %82 = arith.addf %79, %81 : vector<4x128xf32>
    %c0_24 = arith.constant 0 : index
    %c0_25 = arith.constant 0 : index
    %83 = vector.load %arg4[%c0_24, %c0_25] : memref<4x128xf32, #tpu.memory_space<vmem>>, vector<4x128xf32>
    tpu.vector_store %arg4[%c0_24, %c0_25], %82 {strides = array<i32>} : memref<4x128xf32, #tpu.memory_space<vmem>>, vector<4x128xf32>,
    return
  }
  func.func @transform_0(%arg0: i32) -> (i32, i32) {
    %c0_i32 = arith.constant 0 : i32
    %c0_i32_0 = arith.constant 0 : i32
    return %arg0, %c0_i32 : i32, i32
  }
  func.func @transform_1(%arg0: i32) -> (i32, i32) {
    %c0_i32 = arith.constant 0 : i32
    %c0_i32_0 = arith.constant 0 : i32
    %c0_i32_1 = arith.constant 0 : i32
    return %c0_i32, %c0_i32_0 : i32, i32
  }
  func.func @transform_2(%arg0: i32) -> (i32, i32) {
    %c0_i32 = arith.constant 0 : i32
    %c0_i32_0 = arith.constant 0 : i32
    %c0_i32_1 = arith.constant 0 : i32
    return %c0_i32, %c0_i32_0 : i32, i32
  }
  func.func @transform_3(%arg0: i32) -> (i32, i32) {
    %c0_i32 = arith.constant 0 : i32
    %c0_i32_0 = arith.constant 0 : i32
    return %arg0, %c0_i32 : i32, i32
  }
}

</mosaic_0001>

<llo_original>
// kernel: tpu_custom_call.1
$region0: #{tpu_custom_call.1}
  #allocation0 [shape = 'u32[]', space=smem, size = 0x4, offset = 0x4, fixed_abs, tag = 'smem constant byte address 0x4 - core index']
  #allocation1 [shape = 'u32[144,128]{1,0:T(1,128)}', space=vmem, size = 0x12000, scoped, tag = 'internal scratch']
  %s0 = inlined_call_operand.hbm [shape: f32[4,128], index: 0, kind: input, shape index: {}]
  %s1 = inlined_call_operand.vmem [shape: f32[1,128], index: 1, kind: input, shape index: {}]
  %s2 = inlined_call_operand.vmem [shape: f32[1,128], index: 2, kind: input, shape index: {}]
  %s3 = inlined_call_operand.hbm [shape: f32[4,128], index: 3, kind: output, shape index: {}]
  %s4 = sld [smem:[#allocation0]]
  $region26: #{tpu_custom_call.1} parent=0
    _
  %s6 = ssub.s32 1, %s4
  %s7 = scalar_select 0, %s6, %s4
  $region1: #{tpu_custom_call.1} parent=0
    #allocation2 [shape = 'u8[2048]{0}', space=vmem, size = 0x800, scoped, tag = 'input window, operand 0, single buffered']
    #allocation3 [shape = 's32[1]{0}', space=sflag, size = 0x4, scoped, tag = 'scoped memory for tpu_custom_call.1']
    #allocation4 [shape = 's32[1]{0}', space=sflag, size = 0x4, scoped, tag = 'scoped memory for tpu_custom_call.1']
    #allocation5 [shape = 'u8[2048]{0}', space=vmem, size = 0x800, scoped, tag = 'output window, operand 0, single buffered']
    %8 = vsyncpa [#allocation3], 0
    %9 = vsyncpa [#allocation4], 0
    // Predicated region
    $region2: #{tpu_custom_call.1} parent=1 // pred_check
      _
    $region3: #{tpu_custom_call.1} parent=1 // pred_check_branch
      %11 = sbr.rel (0) target = $region5
    $region4: #{tpu_custom_call.1} parent=1 // pred_region
      %s13 = ssub.s32 64, 64
      %14 = vsyncadd [#allocation3], %s13
      %s16 = sshll.u32 [#allocation2], 4
      %s17 = int_to_ptr.vmem [resolvable:$true] %s16
      %19 = dma.hbm_to_vmem [thread:$0]  %s0, 64, %s17, [#allocation3]
    $region5: #{tpu_custom_call.1} parent=1 // pred_fallthru
      _
    // Predicated region
    $region6: #{tpu_custom_call.1} parent=1 // pred_check
      _
    $region7: #{tpu_custom_call.1} parent=1 // pred_check_branch
      %21 = sbr.rel (0) target = $region9
    $region8: #{tpu_custom_call.1} parent=1 // pred_region
      _
    $region9: #{tpu_custom_call.1} parent=1 // pred_fallthru
      _
    // Predicated region
    $region10: #{tpu_custom_call.1} parent=1 // pred_check
      _
    $region11: #{tpu_custom_call.1} parent=1 // pred_check_branch
      %23 = sbr.rel (0) target = $region13
    $region12: #{tpu_custom_call.1} parent=1 // pred_region
      _
    $region13: #{tpu_custom_call.1} parent=1 // pred_fallthru
      _
    // Predicated region
    $region14: #{tpu_custom_call.1} parent=1 // pred_check
      _
    $region15: #{tpu_custom_call.1} parent=1 // pred_check_branch
      %25 = sbr.rel (0) target = $region17
    $region16: #{tpu_custom_call.1} parent=1 // pred_region
      %26 = dma.done [#allocation3], 64
    $region17: #{tpu_custom_call.1} parent=1 // pred_fallthru
      _
    %v27 = vld [vmem:[#allocation2] sm:$0xf]
    %vm28 = vcmask 257024
    %v29 = vsel %vm28, %v27, 0.0
    %30 = vadd.xlane.f32.xlu0 %v29
    %v31 = vpop.xlane.xlu0 %30
    %v32 = vmul.f32 %v31, 0.03125
    %34 = vrot.lane.b32.xlu0 %v27, 96
    %v35 = vpop.permute.xlu0 %34
    %v37 = vsel %vm28, %v35, 0.0
    %38 = vadd.xlane.f32.xlu0 %v37
    %v39 = vpop.xlane.xlu0 %38
    %v40 = vmul.f32 %v39, 0.03125
    %41 = vrot.lane.b32.xlu0 %v27, 64
    %v42 = vpop.permute.xlu0 %41
    %v44 = vsel %vm28, %v42, 0.0
    %45 = vadd.xlane.f32.xlu0 %v44
    %v46 = vpop.xlane.xlu0 %45
    %v47 = vmul.f32 %v46, 0.03125
    %48 = vrot.lane.b32.xlu0 %v27, 32
    %v49 = vpop.permute.xlu0 %48
    %v51 = vsel %vm28, %v49, 0.0
    %52 = vadd.xlane.f32.xlu0 %v51
    %v53 = vpop.xlane.xlu0 %52
    %v54 = vmul.f32 %v53, 0.03125
    %vm55 = vcmask 261120
    %v56 = vsel %vm55, %v32, %v40
    %vm57 = vcmask 523264
    %v58 = vsel %vm57, %v56, %v47
    %vm59 = vcmask 785408
    %v60 = vsel %vm59, %v58, %v54
    %v61 = vsub.f32 %v27, %v60
    %v62 = vmul.f32 %v61, %v61
    %v63 = vsel %vm28, %v62, 0.0
    %64 = vadd.xlane.f32.xlu0 %v63
    %v65 = vpop.xlane.xlu0 %64
    %v66 = vmul.f32 %v65, 0.03125
    %v67 = vadd.f32 %v66, 1e-05
    %v68 = vrsqrt.pop %v67
    %70 = vrot.lane.b32.xlu0 %v62, 96
    %v71 = vpop.permute.xlu0 %70
    %v73 = vsel %vm28, %v71, 0.0
    %74 = vadd.xlane.f32.xlu0 %v73
    %v75 = vpop.xlane.xlu0 %74
    %v76 = vmul.f32 %v75, 0.03125
    %v77 = vadd.f32 %v76, 1e-05
    %v78 = vrsqrt.pop %v77
    %79 = vrot.lane.b32.xlu0 %v62, 64
    %v80 = vpop.permute.xlu0 %79
    %v82 = vsel %vm28, %v80, 0.0
    %83 = vadd.xlane.f32.xlu0 %v82
    %v84 = vpop.xlane.xlu0 %83
    %v85 = vmul.f32 %v84, 0.03125
    %v86 = vadd.f32 %v85, 1e-05
    %v87 = vrsqrt.pop %v86
    %88 = vrot.lane.b32.xlu0 %v62, 32
    %v89 = vpop.permute.xlu0 %88
    %v91 = vsel %vm28, %v89, 0.0
    %92 = vadd.xlane.f32.xlu0 %v91
    %v93 = vpop.xlane.xlu0 %92
    %v94 = vmul.f32 %v93, 0.03125
    %v95 = vadd.f32 %v94, 1e-05
    %v96 = vrsqrt.pop %v95
    %v97 = vsel %vm55, %v68, %v78
    %v98 = vsel %vm57, %v97, %v87
    %v99 = vsel %vm59, %v98, %v96
    %v100 = vld [vmem:[%s1] sm:$0x1]
    %v101 = vmul.f32 %v61, %v99
    %v103 = vlaneseq
    %v104 = vshrl.u32 %v103, 7
    %v105 = vsub.s32 0, %v104
    %v106 = vrot.slane %v100, %v105
    %v108 = vmul.f32 %v106, %v101
    %v109 = vld [vmem:[%s2] sm:$0x1]
    %v111 = vlaneseq
    %v112 = vshrl.u32 %v111, 7
    %v113 = vsub.s32 0, %v112
    %v114 = vrot.slane %v109, %v113
    %v116 = vadd.f32 %v108, %v114
    %117 = vst [vmem:[#allocation5] sm:$0xf] %v116
    // Predicated region
    $region18: #{tpu_custom_call.1} parent=1 // pred_check
      _
    $region19: #{tpu_custom_call.1} parent=1 // pred_check_branch
      %119 = sbr.rel (0) target = $region21
    $region20: #{tpu_custom_call.1} parent=1 // pred_region
      %s121 = ssub.s32 64, 64
      %122 = vsyncadd [#allocation4], %s121
      %s124 = sshll.u32 [#allocation5], 4
      %s125 = int_to_ptr.vmem [resolvable:$true] %s124
      %127 = dma.vmem_to_hbm [thread:$0]  %s125, 64, %s3, [#allocation4]
    $region21: #{tpu_custom_call.1} parent=1 // pred_fallthru
      _
    // Predicated region
    $region22: #{tpu_custom_call.1} parent=1 // pred_check
      _
    $region23: #{tpu_custom_call.1} parent=1 // pred_check_branch
      %129 = sbr.rel (0) target = $region25
    $region24: #{tpu_custom_call.1} parent=1 // pred_region
      %130 = dma.done [#allocation4], 64
    $region25: #{tpu_custom_call.1} parent=1 // pred_fallthru
      _
    %131 = vsyncpa [#allocation3], 1
    %132 = vsyncpa [#allocation4], 1

</llo_original>
